<compile_context>
chip_gen: v6e
topology: v6e:2x2x1
jax: 0.10.0
libtpu: 0.0.40
codegen_flags: <defaults>
</compile_context>

<pallas_src>
import functools

import jax
import jax.numpy as jnp
from jax import lax
from jax.experimental import pallas as pl
from jax.experimental.pallas import tpu as pltpu


def _round_up(x, m):
    return (x + m - 1) // m * m


def _embedding_kernel(idx_ref, table_ref, out_ref):
    """Grouped one-hot MXU gather against a block-diagonal table.

    idx_ref:   (G, t_rows) int32   row j holds idx[r*G + j] + j*V (or a sentinel
                                   >= G*V that never matches -> zero row).
    table_ref: (G*V, G*D)  float32 block-diagonal embedding table (resident).
    out_ref:   (t_rows, G*D)       token r*G + j lands in columns [j*D, (j+1)*D).
    """
    gv = table_ref.shape[0]
    g, t_rows = idx_ref.shape

    idx = idx_ref[...]                                          # (G, t_rows)
    iota_c = lax.broadcasted_iota(jnp.int32, (gv, t_rows), 0)   # column ids

    # Transposed one-hot (G*V, t_rows).  The per-group offsets make the hit
    # ranges disjoint, so summing over groups builds the grouped one-hot
    # without double counting.
    onehot_t = (iota_c == idx[0:1, :]).astype(table_ref.dtype)
    for j in range(1, g):                                       # g <= 8, static unroll
        onehot_t = onehot_t + (iota_c == idx[j:j + 1, :]).astype(table_ref.dtype)

    # MXU matmul with transposed LHS (contract dim 0) -> (t_rows, G*D), lane-dense.
    out_ref[...] = lax.dot_general(
        onehot_t, table_ref[...],
        dimension_numbers=(((0,), (0,)), ((), ())),
        preferred_element_type=jnp.float32,
    ).astype(out_ref.dtype)


@functools.partial(jax.jit, static_argnames=("t_blk",))
def naive_embedding_forward(inputs, emb_table, *, t_blk=4096):
    """inputs: (B, S) integer indices; emb_table: (V, D) float32 -> (B, S, D)."""
    B, S = inputs.shape
    V, D = emb_table.shape
    T = B * S
    lane = 128

    # Group G tokens per output row so each out block is ~128 lanes wide.
    if 0 < D < lane and lane % D == 0 and (lane // D) <= 8:
        G = lane // D
    else:
        G = 1          # fallback: plain (T, D) layout (block spans full last dim)
    GV, GD = G * V, G * D

    # ---- tile-size selection (row-groups of G tokens each) ----
    total_rows = pl.cdiv(T, G)
    target_rows = max(128, t_blk // G)
    if total_rows <= target_rows:
        # Single tile: block spans the whole (padded) array, no 128-multiple
        # requirement on the row count.
        t_rows_blk = _round_up(total_rows, 8)
        rows_pad = t_rows_blk
    else:
        # Multi-tile: lane-dense idx blocks (row count multiple of 128); keep a
        # best-effort >= 4 tiles so v7x's two TensorCores both get work.
        t_rows_blk = _round_up(target_rows, lane)
        desired4 = _round_up(pl.cdiv(total_rows, 4), lane)
        t_rows_blk = max(lane, min(t_rows_blk, desired4))
        rows_pad = _round_up(total_rows, t_rows_blk)
    num_tiles = rows_pad // t_rows_blk
    tokens_pad = rows_pad * G

    # ---- block-diagonal table (G*V, G*D): diagonal block j = emb_table ----
    if G > 1:
        eye = jnp.eye(G, dtype=emb_table.dtype)
        big_table = jnp.einsum("ij,vd->ivjd", eye, emb_table).reshape(GV, GD)
    else:
        big_table = emb_table

    # ---- indices: flatten, pad, add per-group offsets, lane-dense (G, rows) ----
    idx_flat = inputs.reshape(T).astype(jnp.int32)
    if tokens_pad != T:
        idx_flat = jnp.pad(idx_flat, (0, tokens_pad - T))   # pad -> row 0 (zeros), sliced off
    offsets = (jnp.arange(tokens_pad, dtype=jnp.int32) % G) * V
    valid = (idx_flat >= 0) & (idx_flat < V)
    # Out-of-range -> sentinel GV: matches nothing -> zero row (PyTorch would raise).
    idx_off = jnp.where(valid, idx_flat + offsets, jnp.int32(GV))
    idx_2d = idx_off.reshape(rows_pad, G).T                  # (G, rows_pad)

    # ---- tight VMEM budget (v7x: 64 MiB physical / 32 MiB scoped default) ----
    gd_pad = _round_up(GD, lane)
    rows_lane_pad = _round_up(t_rows_blk, lane)
    table_b = 2 * _round_up(GV, 8) * gd_pad * 4
    idx_b = 2 * _round_up(G, 8) * rows_lane_pad * 4
    out_b = 2 * t_rows_blk * gd_pad * 4
    onehot_b = _round_up(GV, 8) * rows_lane_pad * 4
    vmem_limit = int(min(2 * (table_b + idx_b + out_b + onehot_b) + (4 << 20),
                         48 * 1024 * 1024))

    cost = pl.CostEstimate(
        flops=2 * rows_pad * GV * GD,                        # grouped one-hot matmul
        transcendentals=0,
        bytes_accessed=tokens_pad * 4 + tokens_pad * D * 4 + V * D * 4,
    )

    out_grouped = pl.pallas_call(
        _embedding_kernel,
        out_shape=jax.ShapeDtypeStruct((rows_pad, GD), emb_table.dtype),
        grid_spec=pltpu.PrefetchScalarGridSpec(
            num_scalar_prefetch=0,
            grid=(num_tiles,),
            in_specs=[
                pl.BlockSpec((G, t_rows_blk), lambda i: (0, i)),   # lane-dense idx tile
                pl.BlockSpec((GV, GD), lambda i: (0, 0)),          # resident table
            ],
            out_specs=pl.BlockSpec((t_rows_blk, GD), lambda i: (i, 0)),
        ),
        compiler_params=pltpu.CompilerParams(
            dimension_semantics=("parallel",),   # independent tiles; dual-TC on v7x
            vmem_limit_bytes=vmem_limit,
        ),
        cost_estimate=cost,
    )(idx_2d, big_table)

    # (rows_pad, G*D) -> (rows_pad*G, D) is a free view on the contiguous slab.
    return out_grouped.reshape(tokens_pad, D)[:T].reshape(B, S, D)


def make_embedding_table(key, num_edges, edge_dim):
    """Deterministic init matching nn.Embedding(num_edges+1, edge_dim, padding_idx=0)."""
    V = num_edges + 1
    table = jax.random.normal(key, (V, edge_dim), dtype=jnp.float32)
    return table.at[0].set(0.0)     # padding_idx=0 -> zero row


if __name__ == "__main__":
    # Shapes implied by the module: inputs (B, S) integer edge indices,
    # vocab = num_edges + 1 (row 0 = padding), output (B, S, edge_dim).
    num_edges = 12      # args.num_edges -> vocab = 13
    edge_dim = 32       # args.edge_dim

    key = jax.random.PRNGKey(0)
    k_tab, k1, k2, k3 = jax.random.split(key, 4)
    emb_table = make_embedding_table(k_tab, num_edges, edge_dim)

    # Case 1: module's toy shape (single tile, grouped output rows).
    x1 = jax.random.randint(k1, (2, 8), 0, num_edges + 1, dtype=jnp.int32)
    o1 = jax.block_until_ready(naive_embedding_forward(x1, emb_table))
    r1 = jnp.take(emb_table, x1, axis=0)
    assert o1.shape == (2, 8, edge_dim)
    assert jnp.allclose(o1, r1, atol=1e-6), "mismatch vs reference gather (case 1)"
    assert bool(jnp.all(jnp.where((x1 == 0)[..., None], o1 == 0.0, True)))

    # Case 2: token count not a multiple of the group size (T = 21).
    x2 = jax.random.randint(k2, (3, 7), 0, num_edges + 1, dtype=jnp.int32)
    o2 = jax.block_until_ready(naive_embedding_forward(x2, emb_table))
    r2 = jnp.take(emb_table, x2, axis=0)
    assert o2.shape == (3, 7, edge_dim)
    assert jnp.allclose(o2, r2, atol=1e-6), "mismatch vs reference gather (case 2)"

    # Case 3: multi-tile grid + row padding (T = 2080 tokens, t_blk=1024 -> 3 tiles).
    x3 = jax.random.randint(k3, (4, 520), 0, num_edges + 1, dtype=jnp.int32)
    o3 = jax.block_until_ready(naive_embedding_forward(x3, emb_table, t_blk=1024))
    r3 = jnp.take(emb_table, x3, axis=0)
    assert o3.shape == (4, 520, edge_dim)
    assert jnp.allclose(o3, r3, atol=1e-6), "mismatch vs reference gather (case 3)"

    print("KERNEL_OK")
</pallas_src>

<mosaic_0001>
module attributes {stable_mosaic.version = 11 : i64} {
  func.func @_embedding_kernel(%arg0: i32, %arg1: memref<4x8xi32, #tpu.memory_space<vmem>>, %arg2: memref<52x128xf32, #tpu.memory_space<vmem>>, %arg3: memref<8x128xf32, #tpu.memory_space<vmem>>) attributes {dimension_semantics = [#tpu.dimension_semantics<parallel>], iteration_bounds = array<i64: 1>, scalar_prefetch = 0 : i64, scratch_operands = 0 : i64, tpu.core_type = #tpu.core_type<tc>, window_params = [{transform_indices = @transform_0, window_bounds = array<i64: 4, 8>}, {pipeline_mode = #tpu.pipeline_mode<synchronous>, transform_indices = @transform_1, window_bounds = array<i64: 52, 128>}, {transform_indices = @transform_2, window_bounds = array<i64: 8, 128>}]} {
    %c0 = arith.constant 0 : index
    %c0_0 = arith.constant 0 : index
    %0 = vector.load %arg1[%c0, %c0_0] : memref<4x8xi32, #tpu.memory_space<vmem>>, vector<4x8xi32>
    %1 = tpu.iota {dimensions = array<i32: 0>} : vector<52x8xi32>
    %2 = vector.extract_strided_slice %0 {offsets = [0, 0], sizes = [1, 8], strides = [1, 1]} : vector<4x8xi32> to vector<1x8xi32>
    %3 = vector.broadcast %2 : vector<1x8xi32> to vector<52x8xi32>
    %4 = arith.cmpi eq, %1, %3 : vector<52x8xi32>
    %5 = arith.extui %4 : vector<52x8xi1> to vector<52x8xi32>
    %6 = arith.sitofp %5 : vector<52x8xi32> to vector<52x8xf32>
    %7 = vector.extract_strided_slice %0 {offsets = [1, 0], sizes = [1, 8], strides = [1, 1]} : vector<4x8xi32> to vector<1x8xi32>
    %8 = vector.broadcast %7 : vector<1x8xi32> to vector<52x8xi32>
    %9 = arith.cmpi eq, %1, %8 : vector<52x8xi32>
    %10 = arith.extui %9 : vector<52x8xi1> to vector<52x8xi32>
    %11 = arith.sitofp %10 : vector<52x8xi32> to vector<52x8xf32>
    %12 = arith.addf %6, %11 : vector<52x8xf32>
    %13 = vector.extract_strided_slice %0 {offsets = [2, 0], sizes = [1, 8], strides = [1, 1]} : vector<4x8xi32> to vector<1x8xi32>
    %14 = vector.broadcast %13 : vector<1x8xi32> to vector<52x8xi32>
    %15 = arith.cmpi eq, %1, %14 : vector<52x8xi32>
    %16 = arith.extui %15 : vector<52x8xi1> to vector<52x8xi32>
    %17 = arith.sitofp %16 : vector<52x8xi32> to vector<52x8xf32>
    %18 = arith.addf %12, %17 : vector<52x8xf32>
    %19 = vector.extract_strided_slice %0 {offsets = [3, 0], sizes = [1, 8], strides = [1, 1]} : vector<4x8xi32> to vector<1x8xi32>
    %20 = vector.broadcast %19 : vector<1x8xi32> to vector<52x8xi32>
    %21 = arith.cmpi eq, %1, %20 : vector<52x8xi32>
    %22 = arith.extui %21 : vector<52x8xi1> to vector<52x8xi32>
    %23 = arith.sitofp %22 : vector<52x8xi32> to vector<52x8xf32>
    %24 = arith.addf %18, %23 : vector<52x8xf32>
    %c0_1 = arith.constant 0 : index
    %c0_2 = arith.constant 0 : index
    %25 = vector.load %arg2[%c0_1, %c0_2] : memref<52x128xf32, #tpu.memory_space<vmem>>, vector<52x128xf32>
    %cst = arith.constant dense<0.000000e+00> : vector<8x128xf32>
    %26 = tpu.matmul %24, %25, %cst {dimension_numbers = #tpu.dot_dimension_numbers<[0], [0], [1], [1], [0, 1, 1, 1], [], []>} : vector<52x8xf32>, vector<52x128xf32>, vector<8x128xf32> -> vector<8x128xf32>
    %c0_3 = arith.constant 0 : index
    %c0_4 = arith.constant 0 : index
    %27 = vector.load %arg3[%c0_3, %c0_4] : memref<8x128xf32, #tpu.memory_space<vmem>>, vector<8x128xf32>
    tpu.vector_store %arg3[%c0_3, %c0_4], %26 {strides = array<i32>} : memref<8x128xf32, #tpu.memory_space<vmem>>, vector<8x128xf32>,
    return
  }
  func.func @transform_0(%arg0: i32) -> (i32, i32) {
    %c0_i32 = arith.constant 0 : i32
    %c0_i32_0 = arith.constant 0 : i32
    return %c0_i32, %arg0 : i32, i32
  }
  func.func @transform_1(%arg0: i32) -> (i32, i32) {
    %c0_i32 = arith.constant 0 : i32
    %c0_i32_0 = arith.constant 0 : i32
    %c0_i32_1 = arith.constant 0 : i32
    return %c0_i32, %c0_i32_0 : i32, i32
  }
  func.func @transform_2(%arg0: i32) -> (i32, i32) {
    %c0_i32 = arith.constant 0 : i32
    %c0_i32_0 = arith.constant 0 : i32
    return %arg0, %c0_i32 : i32, i32
  }
}

</mosaic_0001>

<llo_original>
// kernel: naive_embedding_forward.1
$region0: #{naive_embedding_forward.1}
  #allocation0 [shape = 'u32[]', space=smem, size = 0x4, offset = 0x4, fixed_abs, tag = 'smem constant byte address 0x4 - core index']
  #allocation1 [shape = 'u32[144,128]{1,0:T(1,128)}', space=vmem, size = 0x12000, scoped, tag = 'internal scratch']
  %s0 = inlined_call_operand.vmem [shape: s32[4,8], index: 0, kind: input, shape index: {}]
  %s1 = inlined_call_operand.vmem [shape: f32[52,128], index: 1, kind: input, shape index: {}]
  %s2 = inlined_call_operand.vmem [shape: f32[8,128], index: 2, kind: output, shape index: {}]
  %s3 = sld [smem:[#allocation0]]
  $region18: #{naive_embedding_forward.1} parent=0
    _
  %s5 = ssub.s32 1, %s3
  %s6 = scalar_select 0, %s5, %s3
  // Predicated region
  $region2: #{naive_embedding_forward.1} parent=0 // pred_check
    _
  $region3: #{naive_embedding_forward.1} parent=0 // pred_check_branch
    %8 = sbr.rel (0) target = $region5
  $region4: #{naive_embedding_forward.1} parent=0 // pred_region
    _
  $region5: #{naive_embedding_forward.1} parent=0 // pred_fallthru
    _
  // Predicated region
  $region6: #{naive_embedding_forward.1} parent=0 // pred_check
    _
  $region7: #{naive_embedding_forward.1} parent=0 // pred_check_branch
    %10 = sbr.rel (0) target = $region9
  $region8: #{naive_embedding_forward.1} parent=0 // pred_region
    _
  $region9: #{naive_embedding_forward.1} parent=0 // pred_fallthru
    _
  %v11 = vld [vmem:[%s0] sm:$0xf]
  %v12 = vlaneseq
  %v13 = vshrl.u32 %v12, 7
  %v14 = vadd.s32 %v13, 8
  %v15 = vadd.s32 %v13, 16
  %v16 = vadd.s32 %v13, 24
  %v17 = vadd.s32 %v13, 32
  %v18 = vadd.s32 %v13, 40
  %v19 = vadd.s32 %v13, 48
  %v20 = vlaneseq
  %v21 = vshrl.u32 %v20, 7
  %v22 = vsub.s32 0, %v21
  %v23 = vrot.slane %v11, %v22
  %vm24 = vcmp.eq.s32.totalorder %v13, %v23
  %vm25 = vcmp.eq.s32.totalorder %v14, %v23
  %vm26 = vcmp.eq.s32.totalorder %v15, %v23
  %vm27 = vcmp.eq.s32.totalorder %v16, %v23
  %vm28 = vcmp.eq.s32.totalorder %v17, %v23
  %vm29 = vcmp.eq.s32.totalorder %v18, %v23
  %vm30 = vcmp.eq.s32.totalorder %v19, %v23
  %v31 = vsel %vm24, 1, 0
  %v32 = vsel %vm25, 1, 0
  %v33 = vsel %vm26, 1, 0
  %v34 = vsel %vm27, 1, 0
  %v35 = vsel %vm28, 1, 0
  %v36 = vsel %vm29, 1, 0
  %v37 = vsel %vm30, 1, 0
  %v38 = vcvt.s32.f32 %v31
  %v39 = vcvt.s32.f32 %v32
  %v40 = vcvt.s32.f32 %v33
  %v41 = vcvt.s32.f32 %v34
  %v42 = vcvt.s32.f32 %v35
  %v43 = vcvt.s32.f32 %v36
  %v44 = vcvt.s32.f32 %v37
  %v45 = vlaneseq
  %v46 = vshrl.u32 %v45, 7
  %v47 = vsub.s32 1, %v46
  %v48 = vrot.slane %v11, %v47
  %vm49 = vcmp.eq.s32.totalorder %v13, %v48
  %vm50 = vcmp.eq.s32.totalorder %v14, %v48
  %vm51 = vcmp.eq.s32.totalorder %v15, %v48
  %vm52 = vcmp.eq.s32.totalorder %v16, %v48
  %vm53 = vcmp.eq.s32.totalorder %v17, %v48
  %vm54 = vcmp.eq.s32.totalorder %v18, %v48
  %vm55 = vcmp.eq.s32.totalorder %v19, %v48
  %v56 = vsel %vm49, 1, 0
  %v57 = vsel %vm50, 1, 0
  %v58 = vsel %vm51, 1, 0
  %v59 = vsel %vm52, 1, 0
  %v60 = vsel %vm53, 1, 0
  %v61 = vsel %vm54, 1, 0
  %v62 = vsel %vm55, 1, 0
  %v63 = vcvt.s32.f32 %v56
  %v64 = vcvt.s32.f32 %v57
  %v65 = vcvt.s32.f32 %v58
  %v66 = vcvt.s32.f32 %v59
  %v67 = vcvt.s32.f32 %v60
  %v68 = vcvt.s32.f32 %v61
  %v69 = vcvt.s32.f32 %v62
  %v70 = vadd.f32 %v38, %v63
  %v71 = vadd.f32 %v39, %v64
  %v72 = vadd.f32 %v40, %v65
  %v73 = vadd.f32 %v41, %v66
  %v74 = vadd.f32 %v42, %v67
  %v75 = vadd.f32 %v43, %v68
  %v76 = vadd.f32 %v44, %v69
  %v77 = vlaneseq
  %v78 = vshrl.u32 %v77, 7
  %v79 = vsub.s32 2, %v78
  %v80 = vrot.slane %v11, %v79
  %vm81 = vcmp.eq.s32.totalorder %v13, %v80
  %vm82 = vcmp.eq.s32.totalorder %v14, %v80
  %vm83 = vcmp.eq.s32.totalorder %v15, %v80
  %vm84 = vcmp.eq.s32.totalorder %v16, %v80
  %vm85 = vcmp.eq.s32.totalorder %v17, %v80
  %vm86 = vcmp.eq.s32.totalorder %v18, %v80
  %vm87 = vcmp.eq.s32.totalorder %v19, %v80
  %v88 = vsel %vm81, 1, 0
  %v89 = vsel %vm82, 1, 0
  %v90 = vsel %vm83, 1, 0
  %v91 = vsel %vm84, 1, 0
  %v92 = vsel %vm85, 1, 0
  %v93 = vsel %vm86, 1, 0
  %v94 = vsel %vm87, 1, 0
  %v95 = vcvt.s32.f32 %v88
  %v96 = vcvt.s32.f32 %v89
  %v97 = vcvt.s32.f32 %v90
  %v98 = vcvt.s32.f32 %v91
  %v99 = vcvt.s32.f32 %v92
  %v100 = vcvt.s32.f32 %v93
  %v101 = vcvt.s32.f32 %v94
  %v102 = vadd.f32 %v70, %v95
  %v103 = vadd.f32 %v71, %v96
  %v104 = vadd.f32 %v72, %v97
  %v105 = vadd.f32 %v73, %v98
  %v106 = vadd.f32 %v74, %v99
  %v107 = vadd.f32 %v75, %v100
  %v108 = vadd.f32 %v76, %v101
  %v109 = vlaneseq
  %v110 = vshrl.u32 %v109, 7
  %v111 = vsub.s32 3, %v110
  %v112 = vrot.slane %v11, %v111
  %vm113 = vcmp.eq.s32.totalorder %v13, %v112
  %vm114 = vcmp.eq.s32.totalorder %v14, %v112
  %vm115 = vcmp.eq.s32.totalorder %v15, %v112
  %vm116 = vcmp.eq.s32.totalorder %v16, %v112
  %vm117 = vcmp.eq.s32.totalorder %v17, %v112
  %vm118 = vcmp.eq.s32.totalorder %v18, %v112
  %vm119 = vcmp.eq.s32.totalorder %v19, %v112
  %v120 = vsel %vm113, 1, 0
  %v121 = vsel %vm114, 1, 0
  %v122 = vsel %vm115, 1, 0
  %v123 = vsel %vm116, 1, 0
  %v124 = vsel %vm117, 1, 0
  %v125 = vsel %vm118, 1, 0
  %v126 = vsel %vm119, 1, 0
  %v127 = vcvt.s32.f32 %v120
  %v128 = vcvt.s32.f32 %v121
  %v129 = vcvt.s32.f32 %v122
  %v130 = vcvt.s32.f32 %v123
  %v131 = vcvt.s32.f32 %v124
  %v132 = vcvt.s32.f32 %v125
  %v133 = vcvt.s32.f32 %v126
  %v134 = vadd.f32 %v102, %v127
  %v135 = vadd.f32 %v103, %v128
  %v136 = vadd.f32 %v104, %v129
  %v137 = vadd.f32 %v105, %v130
  %v138 = vadd.f32 %v106, %v131
  %v139 = vadd.f32 %v107, %v132
  %v140 = vadd.f32 %v108, %v133
  %v141 = vld [vmem:[%s1] sm:$0xff]
  %v142 = vld [vmem:[%s1 + $0x8] sm:$0xff]
  %v143 = vld [vmem:[%s1 + $0x10] sm:$0xff]
  %v144 = vld [vmem:[%s1 + $0x18] sm:$0xff]
  %v145 = vld [vmem:[%s1 + $0x20] sm:$0xff]
  %v146 = vld [vmem:[%s1 + $0x28] sm:$0xff]
  %v147 = vld [vmem:[%s1 + $0x30] sm:$0xf]
  %148 = vxpose.xlu0.b32.start [1/16] %v134, 128
  %149 = vxpose.xlu0.b32.cont [2/16] %v135, 128
  %150 = vxpose.xlu0.b32.cont [3/16] %v136, 128
  %151 = vxpose.xlu0.b32.cont [4/16] %v137, 128
  %152 = vxpose.xlu0.b32.cont [5/16] %v138, 128
  %153 = vxpose.xlu0.b32.cont [6/16] %v139, 128
  %154 = vxpose.xlu0.b32.cont [7/16] %v140, 128
  %155 = vxpose.xlu0.b32.cont [8/16] 0.0, 128
  %156 = vxpose.xlu0.b32.cont [9/16] 0.0, 128
  %157 = vxpose.xlu0.b32.cont [10/16] 0.0, 128
  %158 = vxpose.xlu0.b32.cont [11/16] 0.0, 128
  %159 = vxpose.xlu0.b32.cont [12/16] 0.0, 128
  %160 = vxpose.xlu0.b32.cont [13/16] 0.0, 128
  %161 = vxpose.xlu0.b32.cont [14/16] 0.0, 128
  %162 = vxpose.xlu0.b32.cont [15/16] 0.0, 128
  %163 = vxpose.xlu0.b32.end [16/16] 0.0, 128
  %v164 = vpop.trf.xlu0
  %v165 = vpop.trf.xlu0
  %v166 = vpop.trf.xlu0
  %v167 = vpop.trf.xlu0
  %v168 = vpop.trf.xlu0
  %v169 = vpop.trf.xlu0
  %v170 = vpop.trf.xlu0
  %v171 = vpop.trf.xlu0
  %v172 = vpop.trf.xlu0
  %v173 = vpop.trf.xlu0
  %v174 = vpop.trf.xlu0
  %v175 = vpop.trf.xlu0
  %v176 = vpop.trf.xlu0
  %v177 = vpop.trf.xlu0
  %v178 = vpop.trf.xlu0
  %v179 = vpop.trf.xlu0
  %vm180 = vcmask 424960
  %v182 = vsel %vm180, %v164, 0
  %vm184 = vcmask 1043456
  %v186 = vsel %vm184, %v147, 0
  %188 = vmatprep.subr.mxu0 0.0
  %189 = vmatpush1.msra.mxu0 0.0
  %190 = vmatprep.subr.mxu0 0.0
  %191 = vmatpush1.msra.mxu0 0.0
  %192 = vmatprep.subr.mxu0 0.0
  %193 = vmatpush1.msra.mxu0 0.0
  %194 = vmatprep.subr.mxu0 0.0
  %195 = vmatpush1.msra.mxu0 0.0
  %196 = vmatprep.subr.mxu0 0.0
  %197 = vmatpush1.msra.mxu0 0.0
  %198 = vmatprep.subr.mxu0 0.0
  %199 = vmatpush1.msra.mxu0 0.0
  %200 = vmatprep.subr.mxu0 0.0
  %201 = vmatpush1.msra.mxu0 0.0
  %202 = vmatprep.subr.mxu0 0.0
  %203 = vmatpush1.msra.mxu0 0.0
  %204 = vmatprep.subr.mxu0 0.0
  %205 = vmatpush1.msra.mxu0 0.0
  %206 = vmatprep.subr.mxu0 0.0
  %207 = vmatpush1.msra.mxu0 %v186
  %208 = vmatprep.subr.mxu0 0.0
  %209 = vmatpush1.msra.mxu0 %v146
  %210 = vmatprep.subr.mxu0 0.0
  %211 = vmatpush1.msra.mxu0 %v145
  %212 = vmatprep.subr.mxu0 0.0
  %213 = vmatpush1.msra.mxu0 %v144
  %214 = vmatprep.subr.mxu0 0.0
  %215 = vmatpush1.msra.mxu0 %v143
  %216 = vmatprep.subr.mxu0 0.0
  %217 = vmatpush1.msra.mxu0 %v142
  %218 = vmatprep.subr.mxu0 0.0
  %219 = vmatpush1.msra.mxu0 %v141
  %220 = vmatprep.subr.mxu0 0.0
  %221 = vmatpush2.msra.mxu0 0.0
  %222 = vmatprep.subr.mxu0 0.0
  %223 = vmatpush2.msra.mxu0 0.0
  %224 = vmatprep.subr.mxu0 0.0
  %225 = vmatpush2.msra.mxu0 0.0
  %226 = vmatprep.subr.mxu0 0.0
  %227 = vmatpush2.msra.mxu0 0.0
  %228 = vmatprep.subr.mxu0 0.0
  %229 = vmatpush2.msra.mxu0 0.0
  %230 = vmatprep.subr.mxu0 0.0
  %231 = vmatpush2.msra.mxu0 0.0
  %232 = vmatprep.subr.mxu0 0.0
  %233 = vmatpush2.msra.mxu0 0.0
  %234 = vmatprep.subr.mxu0 0.0
  %235 = vmatpush2.msra.mxu0 0.0
  %236 = vmatprep.subr.mxu0 0.0
  %237 = vmatpush2.msra.mxu0 0.0
  %238 = vmatprep.subr.mxu0 0.0
  %239 = vmatpush2.msra.mxu0 0.0
  %240 = vmatprep.subr.mxu0 0.0
  %241 = vmatpush2.msra.mxu0 0.0
  %242 = vmatprep.subr.mxu0 0.0
  %243 = vmatpush2.msra.mxu0 0.0
  %244 = vmatprep.subr.mxu0 0.0
  %245 = vmatpush2.msra.mxu0 0.0
  %246 = vmatprep.subr.mxu0 0.0
  %247 = vmatpush2.msra.mxu0 0.0
  %248 = vmatprep.subr.mxu0 0.0
  %249 = vmatpush2.msra.mxu0 0.0
  %250 = vmatprep.subr.mxu0 0.0
  %251 = vmatpush2.msra.mxu0 0.0
  %252 = vmatprep.mubr.f32.mxu0 0.0
  %253 = vmatmul.mubr.f32.gmra.mxu0 %v182
  %v254 = vpop.f32.mrf.mxu0
  %v255 = vadd.f32 0.0, %v254
  %v256 = vpop.f32.mrf.mxu0
  %257 = vdwg.mxu0
  %258 = vst [vmem:[%s2] sm:$0xff] %v255
  // Predicated region
  $region10: #{naive_embedding_forward.1} parent=0 // pred_check
    _
  $region11: #{naive_embedding_forward.1} parent=0 // pred_check_branch
    %260 = sbr.rel (0) target = $region13
  $region12: #{naive_embedding_forward.1} parent=0 // pred_region
    _
  $region13: #{naive_embedding_forward.1} parent=0 // pred_fallthru
    _
  // Predicated region
  $region14: #{naive_embedding_forward.1} parent=0 // pred_check
    _
  $region15: #{naive_embedding_forward.1} parent=0 // pred_check_branch
    %262 = sbr.rel (0) target = $region17
  $region16: #{naive_embedding_forward.1} parent=0 // pred_region
    _
  $region17: #{naive_embedding_forward.1} parent=0 // pred_fallthru
    _

</llo_original>
